<compile_context>
chip_gen: v7x
topology: tpu7x:2x2x1
jax: 0.10.0
libtpu: 0.0.40
codegen_flags: <defaults>
</compile_context>

<pallas_src>
import numpy as np
import jax
import jax.numpy as jnp
from jax.experimental import pallas as pl
from jax.experimental.pallas import tpu as pltpu

BATCH = 8          # batch_size
DIM = 32           # embedding dim
TEMPERATURE = 0.5
EPS = 1e-8         # torch.nn.CosineSimilarity default eps


def _ntxent_kernel(zo_ref, zhp_ref, zsp_ref, zsn_ref, out_ref):
    B = BATCH
    inv_t = 1.0 / TEMPERATURE
    f32 = jnp.float32

    zo, zhp, zsp, zsn = zo_ref[...], zhp_ref[...], zsp_ref[...], zsn_ref[...]

    # Half differences: make_rep(a, b) == [d; -d] with d = (a - b) / 2.
    d_ohp = (zo - zhp) * 0.5
    d_osp = (zo - zsp) * 0.5
    d_hpsp = (zhp - zsp) * 0.5
    d_osn = (zo - zsn) * 0.5
    d_hpsn = (zhp - zsn) * 0.5
    d_spsn = (zsp - zsn) * 0.5

    # The three pairs whose full cosine block is consumed, stacked once for a single
    # MXU Gram (contract dim 1 of both operands -> no transposed operand materialized).
    d_full = jnp.concatenate([d_ohp, d_osp, d_hpsp], axis=0)                 # (3B, D)
    dsq = d_full * d_full

    gram = jax.lax.dot_general(
        d_full, d_full, (((1,), (1,)), ((), ())),
        preferred_element_type=f32)                                          # (3B, 3B)

    # Row sums of squares in both orientations, without a sublane->lane transpose:
    #  - sublane-oriented via a cross-lane reduce (feeds positives and row norms),
    #  - lane-oriented via a tiny MXU dot against ones (feeds column norms), which
    #    also arrives pre-broadcast to (B, 3B).
    ss_sub = jnp.sum(dsq, axis=-1, keepdims=True)                            # (3B, 1)
    ones_bd = jnp.ones((B, DIM), f32)
    ss_lane = jax.lax.dot_general(
        ones_bd, dsq, (((1,), (1,)), ((), ())),
        preferred_element_type=f32)                                          # (B, 3B)

    # Lane-pack the three diagonal (B, B) Gram blocks *before* normalizing so the
    # cosine normalization only touches one (B, 3B) tile.
    g_pack = jnp.concatenate(
        [gram[0:B, 0:B], gram[B:2 * B, B:2 * B], gram[2 * B:3 * B, 2 * B:3 * B]],
        axis=1)                                                              # (B, 3B)
    ss_row = jnp.concatenate(
        [jnp.broadcast_to(ss_sub[0:B], (B, B)),
         jnp.broadcast_to(ss_sub[B:2 * B], (B, B)),
         jnp.broadcast_to(ss_sub[2 * B:3 * B], (B, B))], axis=1)             # (B, 3B)
    # PyTorch CosineSimilarity clamps the *product* of norms: max(|a|*|b|, eps).
    denom = jnp.maximum(jnp.sqrt(ss_row * ss_lane), EPS)
    c_pack = g_pack / denom                                                  # (B, 3B)

    # Cosine self-similarity per row (== magnitude of the positive logit); no masked
    # diagonal gather needed: pos = ss / max(ss, eps).
    ss_pack = jnp.concatenate(
        [ss_sub[0:B], ss_sub[B:2 * B], ss_sub[2 * B:3 * B]], axis=1)         # (B, 3)
    pos_pack = ss_pack / jnp.maximum(ss_pack, EPS)                           # (B, 3)

    # Extra positives appended to the logits (pairs vs. soft negative): only their
    # self-cosine is needed, computed directly from each pair's sum of squares.
    def self_pos(d):
        ss = jnp.sum(d * d, axis=-1, keepdims=True)                          # (B, 1)
        return ss / jnp.maximum(ss, EPS)

    p_osn, p_hpsn, p_spsn = self_pos(d_osn), self_pos(d_hpsn), self_pos(d_spsn)
    ex_osn = jnp.exp(-p_osn * inv_t)
    ex_hpsn = jnp.exp(-p_hpsn * inv_t)
    ex_spsn = jnp.exp(-p_spsn * inv_t)
    extras = jnp.concatenate([ex_osn, ex_osn, ex_hpsn + ex_spsn], axis=1)    # (B, 3)

    # Per row i (< B) of loss k, the logit multiset (already / T) is
    #   {+C_k[i,j]/T : j != i} U {-C_k[i,j]/T : all j} U extras_k,
    # and rows i and i+B of the PyTorch loss carry identical multisets.
    # |cos| <= 1 and T = 0.5 bound |logit| <= 2, so f32 exp needs no max-shift.
    # (Revisit this if TEMPERATURE is ever made much smaller, e.g. < ~0.02.)
    ep = jnp.exp(c_pack * inv_t)
    em = jnp.exp(-c_pack * inv_t)

    # Per-block row sums on the otherwise-idle MXU (one-hot block selector), then remove
    # the +diagonal term algebraically: exp(+C_k[i,i]/T) == exp(pos/T).
    row = jax.lax.broadcasted_iota(jnp.int32, (3 * B, 3), 0)
    col = jax.lax.broadcasted_iota(jnp.int32, (3 * B, 3), 1)
    sel = ((row >= col * B) & (row < (col + 1) * B)).astype(f32)             # (3B, 3)
    z_sum = jax.lax.dot_general(
        ep + em, sel, (((1,), (0,)), ((), ())),
        preferred_element_type=f32)                                          # (B, 3)
    z_sum = z_sum - jnp.exp(pos_pack * inv_t) + extras

    # Cross-entropy with label 0: lse - positive_logit, positive_logit = -pos/T.
    ce = jnp.log(z_sum) + pos_pack * inv_t                                   # (B, 3)

    # Rows i and i+B are identical, so loss_k = 2 * sum_{i<B} ce / (2B) = sum ce / B.
    out_ref[...] = jnp.sum(ce, axis=0, keepdims=True) * (1.0 / B)            # (1, 3)


@jax.jit
def weight_ntxent_loss(z_ori, z_hard_pos, z_soft_pos, z_soft_neg):
    # Four separate VMEM operands (no wrapper-side concat / extra HBM round trip).
    return pl.pallas_call(
        _ntxent_kernel,
        out_shape=jax.ShapeDtypeStruct((1, 3), jnp.float32),
        in_specs=[pl.BlockSpec(memory_space=pltpu.MemorySpace.VMEM)] * 4,
        out_specs=pl.BlockSpec(memory_space=pltpu.MemorySpace.VMEM),
    )(z_ori, z_hard_pos, z_soft_pos, z_soft_neg)
    # Returns the packed (1, 3) losses; index on the caller side (outside jit).


# ----------------------------------------------------------------------------
# Pure-JAX reference that mirrors the PyTorch module literally (mask gather,
# cat of positives/negatives, CrossEntropyLoss(reduction='sum') w/ labels 0).
# ----------------------------------------------------------------------------
def _reference(z_ori, z_hp, z_sp, z_sn):
    B = z_ori.shape[0]
    N = 2 * B
    T = TEMPERATURE

    def rep(a, b):
        avg = (a + b) / 2.0
        return jnp.concatenate([a - avg, b - avg], axis=0)

    def sim(r):
        d = jnp.dot(r, r.T, precision=jax.lax.Precision.HIGHEST)
        n = jnp.sqrt(jnp.sum(r * r, axis=-1, keepdims=True))
        return d / jnp.maximum(n * n.T, EPS)

    mask_np = ~(np.eye(N, dtype=bool)
                | np.eye(N, N, k=B, dtype=bool)
                | np.eye(N, N, k=-B, dtype=bool))
    neg_idx = np.where(mask_np.reshape(-1))[0]

    def pos(s):
        return jnp.concatenate(
            [jnp.diagonal(s, offset=B), jnp.diagonal(s, offset=-B)]).reshape(N, 1)

    def neg(s):
        return s.reshape(-1)[neg_idx].reshape(N, -1)

    s_ohp, s_osp, s_osn = sim(rep(z_ori, z_hp)), sim(rep(z_ori, z_sp)), sim(rep(z_ori, z_sn))
    s_hpsp, s_hpsn, s_spsn = sim(rep(z_hp, z_sp)), sim(rep(z_hp, z_sn)), sim(rep(z_sp, z_sn))

    logits_ohp = jnp.concatenate([pos(s_ohp), neg(s_ohp), pos(s_osn)], axis=1) / T
    logits_osp = jnp.concatenate([pos(s_osp), neg(s_osp), pos(s_osn)], axis=1) / T
    logits_hpsp = jnp.concatenate([pos(s_hpsp), neg(s_hpsp), pos(s_hpsn), pos(s_spsn)], axis=1) / T

    def ce(logits):
        lse = jax.scipy.special.logsumexp(logits, axis=1)
        return jnp.sum(lse - logits[:, 0])

    return ce(logits_ohp) / N, ce(logits_osp) / N, ce(logits_hpsp) / N


if __name__ == "__main__":
    key = jax.random.PRNGKey(0)
    k1, k2, k3, k4 = jax.random.split(key, 4)
    z_ori = jax.random.normal(k1, (BATCH, DIM), dtype=jnp.float32)
    z_hard_pos = jax.random.normal(k2, (BATCH, DIM), dtype=jnp.float32)
    z_soft_pos = jax.random.normal(k3, (BATCH, DIM), dtype=jnp.float32)
    z_soft_neg = jax.random.normal(k4, (BATCH, DIM), dtype=jnp.float32)

    losses = weight_ntxent_loss(z_ori, z_hard_pos, z_soft_pos, z_soft_neg)
    jax.block_until_ready(losses)
    l1 = np.asarray(losses[0, 0])
    l2 = np.asarray(losses[0, 1])
    l3 = np.asarray(losses[0, 2])

    r1, r2, r3 = _reference(z_ori, z_hard_pos, z_soft_pos, z_soft_neg)
    # Observed error at B=8/D=32 is ~1e-6 with f32 MXU contraction; the slack below only
    # covers a potential reduced-precision (bf16) MXU contraction mode on some backends
    # and EUP transcendental differences vs. the HIGHEST-precision XLA reference.
    np.testing.assert_allclose(l1, np.asarray(r1), rtol=2e-3, atol=2e-3)
    np.testing.assert_allclose(l2, np.asarray(r2), rtol=2e-3, atol=2e-3)
    np.testing.assert_allclose(l3, np.asarray(r3), rtol=2e-3, atol=2e-3)

    print("KERNEL_OK")
</pallas_src>

<mosaic_0001>
module attributes {stable_mosaic.version = 11 : i64} {
  func.func @_ntxent_kernel(%arg0: memref<8x32xf32, #tpu.memory_space<vmem>>, %arg1: memref<8x32xf32, #tpu.memory_space<vmem>>, %arg2: memref<8x32xf32, #tpu.memory_space<vmem>>, %arg3: memref<8x32xf32, #tpu.memory_space<vmem>>, %arg4: memref<1x3xf32, #tpu.memory_space<vmem>>) attributes {dimension_semantics = [], scalar_prefetch = 0 : i64, scratch_operands = 0 : i64, tpu.core_type = #tpu.core_type<tc>} {
    %c0 = arith.constant 0 : index
    %c0_0 = arith.constant 0 : index
    %0 = vector.load %arg0[%c0, %c0_0] : memref<8x32xf32, #tpu.memory_space<vmem>>, vector<8x32xf32>
    %c0_1 = arith.constant 0 : index
    %c0_2 = arith.constant 0 : index
    %1 = vector.load %arg1[%c0_1, %c0_2] : memref<8x32xf32, #tpu.memory_space<vmem>>, vector<8x32xf32>
    %c0_3 = arith.constant 0 : index
    %c0_4 = arith.constant 0 : index
    %2 = vector.load %arg2[%c0_3, %c0_4] : memref<8x32xf32, #tpu.memory_space<vmem>>, vector<8x32xf32>
    %c0_5 = arith.constant 0 : index
    %c0_6 = arith.constant 0 : index
    %3 = vector.load %arg3[%c0_5, %c0_6] : memref<8x32xf32, #tpu.memory_space<vmem>>, vector<8x32xf32>
    %4 = arith.subf %0, %1 : vector<8x32xf32>
    %cst = arith.constant 5.000000e-01 : f32
    %5 = vector.broadcast %cst : f32 to vector<8x32xf32>
    %6 = arith.mulf %4, %5 : vector<8x32xf32>
    %7 = arith.subf %0, %2 : vector<8x32xf32>
    %cst_7 = arith.constant 5.000000e-01 : f32
    %8 = vector.broadcast %cst_7 : f32 to vector<8x32xf32>
    %9 = arith.mulf %7, %8 : vector<8x32xf32>
    %10 = arith.subf %1, %2 : vector<8x32xf32>
    %cst_8 = arith.constant 5.000000e-01 : f32
    %11 = vector.broadcast %cst_8 : f32 to vector<8x32xf32>
    %12 = arith.mulf %10, %11 : vector<8x32xf32>
    %13 = arith.subf %0, %3 : vector<8x32xf32>
    %cst_9 = arith.constant 5.000000e-01 : f32
    %14 = vector.broadcast %cst_9 : f32 to vector<8x32xf32>
    %15 = arith.mulf %13, %14 : vector<8x32xf32>
    %16 = arith.subf %1, %3 : vector<8x32xf32>
    %cst_10 = arith.constant 5.000000e-01 : f32
    %17 = vector.broadcast %cst_10 : f32 to vector<8x32xf32>
    %18 = arith.mulf %16, %17 : vector<8x32xf32>
    %19 = arith.subf %2, %3 : vector<8x32xf32>
    %cst_11 = arith.constant 5.000000e-01 : f32
    %20 = vector.broadcast %cst_11 : f32 to vector<8x32xf32>
    %21 = arith.mulf %19, %20 : vector<8x32xf32>
    %22 = tpu.concatenate %6, %9, %12 in 0 : vector<8x32xf32>, vector<8x32xf32>, vector<8x32xf32> -> vector<24x32xf32>
    %23 = arith.mulf %22, %22 : vector<24x32xf32>
    %cst_12 = arith.constant dense<0.000000e+00> : vector<24x24xf32>
    %24 = tpu.matmul %22, %22, %cst_12 {dimension_numbers = #tpu.dot_dimension_numbers<[1], [1], [0], [0], [0, 0, 1, 0], [], []>} : vector<24x32xf32>, vector<24x32xf32>, vector<24x24xf32> -> vector<24x24xf32>
    %cst_13 = arith.constant dense<0.000000e+00> : vector<24xf32>
    %25 = vector.multi_reduction <add>, %23, %cst_13 [1] : vector<24x32xf32> to vector<24xf32>
    %26 = vector.shape_cast %25 : vector<24xf32> to vector<24x1xf32>
    %cst_14 = arith.constant 1.000000e+00 : f32
    %27 = vector.broadcast %cst_14 : f32 to vector<8x32xf32>
    %cst_15 = arith.constant dense<0.000000e+00> : vector<8x24xf32>
    %28 = tpu.matmul %27, %23, %cst_15 {dimension_numbers = #tpu.dot_dimension_numbers<[1], [1], [0], [0], [0, 0, 1, 0], [], []>} : vector<8x32xf32>, vector<24x32xf32>, vector<8x24xf32> -> vector<8x24xf32>
    %29 = vector.extract_strided_slice %24 {offsets = [0, 0], sizes = [8, 8], strides = [1, 1]} : vector<24x24xf32> to vector<8x8xf32>
    %30 = vector.extract_strided_slice %24 {offsets = [8, 8], sizes = [8, 8], strides = [1, 1]} : vector<24x24xf32> to vector<8x8xf32>
    %31 = vector.extract_strided_slice %24 {offsets = [16, 16], sizes = [8, 8], strides = [1, 1]} : vector<24x24xf32> to vector<8x8xf32>
    %32 = tpu.concatenate %29, %30, %31 in 1 : vector<8x8xf32>, vector<8x8xf32>, vector<8x8xf32> -> vector<8x24xf32>
    %33 = vector.extract_strided_slice %26 {offsets = [0, 0], sizes = [8, 1], strides = [1, 1]} : vector<24x1xf32> to vector<8x1xf32>
    %34 = vector.shape_cast %33 : vector<8x1xf32> to vector<8x1xf32>
    %35 = vector.broadcast %34 : vector<8x1xf32> to vector<8x8xf32>
    %36 = vector.extract_strided_slice %26 {offsets = [8, 0], sizes = [8, 1], strides = [1, 1]} : vector<24x1xf32> to vector<8x1xf32>
    %37 = vector.shape_cast %36 : vector<8x1xf32> to vector<8x1xf32>
    %38 = vector.broadcast %37 : vector<8x1xf32> to vector<8x8xf32>
    %39 = vector.extract_strided_slice %26 {offsets = [16, 0], sizes = [8, 1], strides = [1, 1]} : vector<24x1xf32> to vector<8x1xf32>
    %40 = vector.shape_cast %39 : vector<8x1xf32> to vector<8x1xf32>
    %41 = vector.broadcast %40 : vector<8x1xf32> to vector<8x8xf32>
    %42 = tpu.concatenate %35, %38, %41 in 1 : vector<8x8xf32>, vector<8x8xf32>, vector<8x8xf32> -> vector<8x24xf32>
    %43 = arith.mulf %42, %28 : vector<8x24xf32>
    %44 = math.sqrt %43 : vector<8x24xf32>
    %cst_16 = arith.constant 9.99999993E-9 : f32
    %45 = vector.broadcast %cst_16 : f32 to vector<8x24xf32>
    %46 = arith.maximumf %44, %45 : vector<8x24xf32>
    %47 = arith.divf %32, %46 : vector<8x24xf32>
    %48 = vector.extract_strided_slice %26 {offsets = [0, 0], sizes = [8, 1], strides = [1, 1]} : vector<24x1xf32> to vector<8x1xf32>
    %49 = vector.extract_strided_slice %26 {offsets = [8, 0], sizes = [8, 1], strides = [1, 1]} : vector<24x1xf32> to vector<8x1xf32>
    %50 = vector.extract_strided_slice %26 {offsets = [16, 0], sizes = [8, 1], strides = [1, 1]} : vector<24x1xf32> to vector<8x1xf32>
    %51 = tpu.concatenate %48, %49, %50 in 1 : vector<8x1xf32>, vector<8x1xf32>, vector<8x1xf32> -> vector<8x3xf32>
    %cst_17 = arith.constant 9.99999993E-9 : f32
    %52 = vector.broadcast %cst_17 : f32 to vector<8x3xf32>
    %53 = arith.maximumf %51, %52 : vector<8x3xf32>
    %54 = arith.divf %51, %53 : vector<8x3xf32>
    %55 = arith.mulf %15, %15 : vector<8x32xf32>
    %cst_18 = arith.constant dense<0.000000e+00> : vector<8xf32>
    %56 = vector.multi_reduction <add>, %55, %cst_18 [1] : vector<8x32xf32> to vector<8xf32>
    %57 = vector.shape_cast %56 : vector<8xf32> to vector<8x1xf32>
    %cst_19 = arith.constant 9.99999993E-9 : f32
    %58 = vector.broadcast %cst_19 : f32 to vector<8x1xf32>
    %59 = arith.maximumf %57, %58 : vector<8x1xf32>
    %60 = arith.divf %57, %59 : vector<8x1xf32>
    %61 = arith.mulf %18, %18 : vector<8x32xf32>
    %cst_20 = arith.constant dense<0.000000e+00> : vector<8xf32>
    %62 = vector.multi_reduction <add>, %61, %cst_20 [1] : vector<8x32xf32> to vector<8xf32>
    %63 = vector.shape_cast %62 : vector<8xf32> to vector<8x1xf32>
    %cst_21 = arith.constant 9.99999993E-9 : f32
    %64 = vector.broadcast %cst_21 : f32 to vector<8x1xf32>
    %65 = arith.maximumf %63, %64 : vector<8x1xf32>
    %66 = arith.divf %63, %65 : vector<8x1xf32>
    %67 = arith.mulf %21, %21 : vector<8x32xf32>
    %cst_22 = arith.constant dense<0.000000e+00> : vector<8xf32>
    %68 = vector.multi_reduction <add>, %67, %cst_22 [1] : vector<8x32xf32> to vector<8xf32>
    %69 = vector.shape_cast %68 : vector<8xf32> to vector<8x1xf32>
    %cst_23 = arith.constant 9.99999993E-9 : f32
    %70 = vector.broadcast %cst_23 : f32 to vector<8x1xf32>
    %71 = arith.maximumf %69, %70 : vector<8x1xf32>
    %72 = arith.divf %69, %71 : vector<8x1xf32>
    %cst_24 = arith.constant 0.000000e+00 : f32
    %73 = vector.broadcast %cst_24 : f32 to vector<8x1xf32>
    %74 = arith.subf %73, %60 : vector<8x1xf32>
    %cst_25 = arith.constant 2.000000e+00 : f32
    %75 = vector.broadcast %cst_25 : f32 to vector<8x1xf32>
    %76 = arith.mulf %74, %75 : vector<8x1xf32>
    %77 = math.exp %76 : vector<8x1xf32>
    %cst_26 = arith.constant 0.000000e+00 : f32
    %78 = vector.broadcast %cst_26 : f32 to vector<8x1xf32>
    %79 = arith.subf %78, %66 : vector<8x1xf32>
    %cst_27 = arith.constant 2.000000e+00 : f32
    %80 = vector.broadcast %cst_27 : f32 to vector<8x1xf32>
    %81 = arith.mulf %79, %80 : vector<8x1xf32>
    %82 = math.exp %81 : vector<8x1xf32>
    %cst_28 = arith.constant 0.000000e+00 : f32
    %83 = vector.broadcast %cst_28 : f32 to vector<8x1xf32>
    %84 = arith.subf %83, %72 : vector<8x1xf32>
    %cst_29 = arith.constant 2.000000e+00 : f32
    %85 = vector.broadcast %cst_29 : f32 to vector<8x1xf32>
    %86 = arith.mulf %84, %85 : vector<8x1xf32>
    %87 = math.exp %86 : vector<8x1xf32>
    %88 = arith.addf %82, %87 : vector<8x1xf32>
    %89 = tpu.concatenate %77, %77, %88 in 1 : vector<8x1xf32>, vector<8x1xf32>, vector<8x1xf32> -> vector<8x3xf32>
    %cst_30 = arith.constant 2.000000e+00 : f32
    %90 = vector.broadcast %cst_30 : f32 to vector<8x24xf32>
    %91 = arith.mulf %47, %90 : vector<8x24xf32>
    %92 = math.exp %91 : vector<8x24xf32>
    %cst_31 = arith.constant 0.000000e+00 : f32
    %93 = vector.broadcast %cst_31 : f32 to vector<8x24xf32>
    %94 = arith.subf %93, %47 : vector<8x24xf32>
    %cst_32 = arith.constant 2.000000e+00 : f32
    %95 = vector.broadcast %cst_32 : f32 to vector<8x24xf32>
    %96 = arith.mulf %94, %95 : vector<8x24xf32>
    %97 = math.exp %96 : vector<8x24xf32>
    %98 = tpu.iota {dimensions = array<i32: 0>} : vector<24x3xi32>
    %99 = tpu.iota {dimensions = array<i32: 1>} : vector<24x3xi32>
    %c8_i32 = arith.constant 8 : i32
    %100 = vector.broadcast %c8_i32 : i32 to vector<24x3xi32>
    %101 = arith.muli %99, %100 : vector<24x3xi32>
    %102 = arith.cmpi sge, %98, %101 : vector<24x3xi32>
    %c1_i32 = arith.constant 1 : i32
    %103 = vector.broadcast %c1_i32 : i32 to vector<24x3xi32>
    %104 = arith.addi %99, %103 : vector<24x3xi32>
    %c8_i32_33 = arith.constant 8 : i32
    %105 = vector.broadcast %c8_i32_33 : i32 to vector<24x3xi32>
    %106 = arith.muli %104, %105 : vector<24x3xi32>
    %107 = arith.cmpi slt, %98, %106 : vector<24x3xi32>
    %108 = arith.andi %102, %107 : vector<24x3xi1>
    %109 = arith.extui %108 : vector<24x3xi1> to vector<24x3xi32>
    %110 = arith.sitofp %109 : vector<24x3xi32> to vector<24x3xf32>
    %111 = arith.addf %92, %97 : vector<8x24xf32>
    %cst_34 = arith.constant dense<0.000000e+00> : vector<8x3xf32>
    %112 = tpu.matmul %111, %110, %cst_34 {dimension_numbers = #tpu.dot_dimension_numbers<[1], [0], [0], [1], [0, 0, 1, 1], [], []>} : vector<8x24xf32>, vector<24x3xf32>, vector<8x3xf32> -> vector<8x3xf32>
    %cst_35 = arith.constant 2.000000e+00 : f32
    %113 = vector.broadcast %cst_35 : f32 to vector<8x3xf32>
    %114 = arith.mulf %54, %113 : vector<8x3xf32>
    %115 = math.exp %114 : vector<8x3xf32>
    %116 = arith.subf %112, %115 : vector<8x3xf32>
    %117 = arith.addf %116, %89 : vector<8x3xf32>
    %118 = math.log %117 : vector<8x3xf32>
    %cst_36 = arith.constant 2.000000e+00 : f32
    %119 = vector.broadcast %cst_36 : f32 to vector<8x3xf32>
    %120 = arith.mulf %54, %119 : vector<8x3xf32>
    %121 = arith.addf %118, %120 : vector<8x3xf32>
    %cst_37 = arith.constant dense<0.000000e+00> : vector<3xf32>
    %122 = vector.multi_reduction <add>, %121, %cst_37 [0] : vector<8x3xf32> to vector<3xf32>
    %123 = vector.shape_cast %122 : vector<3xf32> to vector<1x3xf32>
    %cst_38 = arith.constant 1.250000e-01 : f32
    %124 = vector.broadcast %cst_38 : f32 to vector<1x3xf32>
    %125 = arith.mulf %123, %124 : vector<1x3xf32>
    %c0_39 = arith.constant 0 : index
    %c0_40 = arith.constant 0 : index
    %126 = vector.load %arg4[%c0_39, %c0_40] : memref<1x3xf32, #tpu.memory_space<vmem>>, vector<1x3xf32>
    tpu.vector_store %arg4[%c0_39, %c0_40], %125 {strides = array<i32>} : memref<1x3xf32, #tpu.memory_space<vmem>>, vector<1x3xf32>,
    return
  }
}

</mosaic_0001>

<llo_original>
// kernel: weight_ntxent_loss.1
$region0: #{weight_ntxent_loss.1}
  #allocation0 [shape = 'u32[]', space=smem, size = 0x4, offset = 0x4, fixed_abs, tag = 'smem constant byte address 0x4 - core index']
  #allocation1 [shape = 'u32[144,128]{1,0:T(1,128)}', space=vmem, size = 0x12000, scoped, tag = 'internal scratch']
  %s0 = inlined_call_operand.hbm [shape: f32[8,32], index: 0, kind: input, shape index: {}]
  %s1 = inlined_call_operand.hbm [shape: f32[8,32], index: 1, kind: input, shape index: {}]
  %s2 = inlined_call_operand.hbm [shape: f32[8,32], index: 2, kind: input, shape index: {}]
  %s3 = inlined_call_operand.vmem [shape: f32[8,32], index: 3, kind: input, shape index: {}]
  %s4 = inlined_call_operand.hbm [shape: f32[1,3], index: 4, kind: output, shape index: {}]
  %s5 = sld [smem:[#allocation0]]
  $region38: #{weight_ntxent_loss.1} parent=0
    _
  %s7 = ssub.s32 1, %s5
  %s8 = scalar_select 0, %s7, %s5
  $region1: #{weight_ntxent_loss.1} parent=0
    #allocation2 [shape = 'u8[4096]{0}', space=vmem, size = 0x1000, scoped, tag = 'input window, operand 0, single buffered']
    #allocation3 [shape = 's32[1]{0}', space=sflag, size = 0x4, scoped, tag = 'scoped memory for weight_ntxent_loss.1']
    #allocation4 [shape = 's32[1]{0}', space=sflag, size = 0x4, scoped, tag = 'scoped memory for weight_ntxent_loss.1']
    #allocation5 [shape = 'u8[4096]{0}', space=vmem, size = 0x1000, scoped, tag = 'input window, operand 1, single buffered']
    #allocation6 [shape = 's32[1]{0}', space=sflag, size = 0x4, scoped, tag = 'scoped memory for weight_ntxent_loss.1']
    #allocation7 [shape = 'u8[4096]{0}', space=vmem, size = 0x1000, scoped, tag = 'input window, operand 2, single buffered']
    #allocation8 [shape = 'u8[512]{0}', space=vmem, size = 0x400, scoped, tag = 'output window, operand 0, single buffered']
    %9 = vsyncpa [#allocation3], 0
    %10 = vsyncpa [#allocation6], 0
    %11 = vsyncpa [#allocation4], 0
    // Predicated region
    $region2: #{weight_ntxent_loss.1} parent=1 // pred_check
      _
    $region3: #{weight_ntxent_loss.1} parent=1 // pred_check_branch
      %13 = sbr.rel (0) target = $region5
    $region4: #{weight_ntxent_loss.1} parent=1 // pred_region
      %s15 = ssub.s32 128, 128
      %16 = vsyncadd [#allocation3], %s15
      %s18 = sshll.u32 [#allocation2], 4
      %s19 = int_to_ptr.vmem [resolvable:$true] %s18
      %21 = dma.hbm_to_vmem [thread:$0]  %s0, 128, %s19, [#allocation3]
    $region5: #{weight_ntxent_loss.1} parent=1 // pred_fallthru
      _
    // Predicated region
    $region6: #{weight_ntxent_loss.1} parent=1 // pred_check
      _
    $region7: #{weight_ntxent_loss.1} parent=1 // pred_check_branch
      %23 = sbr.rel (0) target = $region9
    $region8: #{weight_ntxent_loss.1} parent=1 // pred_region
      %s25 = ssub.s32 128, 128
      %26 = vsyncadd [#allocation6], %s25
      %s28 = sshll.u32 [#allocation5], 4
      %s29 = int_to_ptr.vmem [resolvable:$true] %s28
      %31 = dma.hbm_to_vmem [thread:$0]  %s1, 128, %s29, [#allocation6]
    $region9: #{weight_ntxent_loss.1} parent=1 // pred_fallthru
      _
    // Predicated region
    $region10: #{weight_ntxent_loss.1} parent=1 // pred_check
      _
    $region11: #{weight_ntxent_loss.1} parent=1 // pred_check_branch
      %33 = sbr.rel (0) target = $region13
    $region12: #{weight_ntxent_loss.1} parent=1 // pred_region
      %s35 = ssub.s32 128, 128
      %36 = vsyncadd [#allocation6], %s35
      %s38 = sshll.u32 [#allocation7], 4
      %s39 = int_to_ptr.vmem [resolvable:$true] %s38
      %41 = dma.hbm_to_vmem [thread:$0]  %s2, 128, %s39, [#allocation6]
    $region13: #{weight_ntxent_loss.1} parent=1 // pred_fallthru
      _
    // Predicated region
    $region14: #{weight_ntxent_loss.1} parent=1 // pred_check
      _
    $region15: #{weight_ntxent_loss.1} parent=1 // pred_check_branch
      %43 = sbr.rel (0) target = $region17
    $region16: #{weight_ntxent_loss.1} parent=1 // pred_region
      _
    $region17: #{weight_ntxent_loss.1} parent=1 // pred_fallthru
      _
    // Predicated region
    $region18: #{weight_ntxent_loss.1} parent=1 // pred_check
      _
    $region19: #{weight_ntxent_loss.1} parent=1 // pred_check_branch
      %45 = sbr.rel (0) target = $region21
    $region20: #{weight_ntxent_loss.1} parent=1 // pred_region
      %46 = dma.done [#allocation3], 128
    $region21: #{weight_ntxent_loss.1} parent=1 // pred_fallthru
      _
    // Predicated region
    $region22: #{weight_ntxent_loss.1} parent=1 // pred_check
      _
    $region23: #{weight_ntxent_loss.1} parent=1 // pred_check_branch
      %48 = sbr.rel (0) target = $region25
    $region24: #{weight_ntxent_loss.1} parent=1 // pred_region
      %49 = dma.done [#allocation6], 128
    $region25: #{weight_ntxent_loss.1} parent=1 // pred_fallthru
      _
    // Predicated region
    $region26: #{weight_ntxent_loss.1} parent=1 // pred_check
      _
    $region27: #{weight_ntxent_loss.1} parent=1 // pred_check_branch
      %51 = sbr.rel (0) target = $region29
    $region28: #{weight_ntxent_loss.1} parent=1 // pred_region
      %52 = dma.done [#allocation6], 128
    $region29: #{weight_ntxent_loss.1} parent=1 // pred_fallthru
      _
    %v53 = vld [vmem:[#allocation2] sm:$0xff]
    %v54 = vld [vmem:[#allocation5] sm:$0xff]
    %v55 = vld [vmem:[#allocation7] sm:$0xff]
    %v56 = vld [vmem:[%s3] sm:$0xff]
    %v57 = vsub.f32 %v53, %v54
    %v58 = vmul.f32 %v57, 0.5
    %v59 = vsub.f32 %v53, %v55
    %v60 = vmul.f32 %v59, 0.5
    %v61 = vsub.f32 %v54, %v55
    %v62 = vmul.f32 %v61, 0.5
    %v63 = vsub.f32 %v53, %v56
    %v64 = vmul.f32 %v63, 0.5
    %v65 = vsub.f32 %v54, %v56
    %v66 = vmul.f32 %v65, 0.5
    %v67 = vsub.f32 %v55, %v56
    %v68 = vmul.f32 %v67, 0.5
    %v69 = vmul.f32 %v58, %v58
    %v70 = vmul.f32 %v60, %v60
    %v71 = vmul.f32 %v62, %v62
    %vm72 = vcmask 261120
    %v74 = vsel %vm72, %v58, 0
    %v77 = vsel %vm72, %v60, 0
    %v80 = vsel %vm72, %v62, 0
    %82 = vmatprep.subr.mxu0 0.0
    %83 = vmatpush1.xpose.msra.mxu0 %v74
    %84 = vmatprep.subr.mxu0 0.0
    %85 = vmatpush1.xpose.msra.mxu0 %v77
    %86 = vmatprep.subr.mxu0 0.0
    %87 = vmatpush1.xpose.msra.mxu0 %v80
    %88 = vmatprep.subr.mxu0 0.0
    %89 = vmatpush1.xpose.msra.mxu0 0.0
    %90 = vmatprep.subr.mxu0 0.0
    %91 = vmatpush1.xpose.msra.mxu0 0.0
    %92 = vmatprep.subr.mxu0 0.0
    %93 = vmatpush1.xpose.msra.mxu0 0.0
    %94 = vmatprep.subr.mxu0 0.0
    %95 = vmatpush1.xpose.msra.mxu0 0.0
    %96 = vmatprep.subr.mxu0 0.0
    %97 = vmatpush1.xpose.msra.mxu0 0.0
    %98 = vmatprep.subr.mxu0 0.0
    %99 = vmatpush1.xpose.msra.mxu0 0.0
    %100 = vmatprep.subr.mxu0 0.0
    %101 = vmatpush1.xpose.msra.mxu0 0.0
    %102 = vmatprep.subr.mxu0 0.0
    %103 = vmatpush1.xpose.msra.mxu0 0.0
    %104 = vmatprep.subr.mxu0 0.0
    %105 = vmatpush1.xpose.msra.mxu0 0.0
    %106 = vmatprep.subr.mxu0 0.0
    %107 = vmatpush1.xpose.msra.mxu0 0.0
    %108 = vmatprep.subr.mxu0 0.0
    %109 = vmatpush1.xpose.msra.mxu0 0.0
    %110 = vmatprep.subr.mxu0 0.0
    %111 = vmatpush1.xpose.msra.mxu0 0.0
    %112 = vmatprep.subr.mxu0 0.0
    %113 = vmatpush1.xpose.msra.mxu0 0.0
    %114 = vmatprep.subr.mxu0 0.0
    %115 = vmatpush1.xpose.msra.mxu0 0.0
    %116 = vmatprep.subr.mxu0 0.0
    %117 = vmatpush1.xpose.msra.mxu0 0.0
    %118 = vmatprep.subr.mxu0 0.0
    %119 = vmatpush1.xpose.msra.mxu0 0.0
    %120 = vmatprep.subr.mxu0 0.0
    %121 = vmatpush1.xpose.msra.mxu0 0.0
    %122 = vmatprep.subr.mxu0 0.0
    %123 = vmatpush1.xpose.msra.mxu0 0.0
    %124 = vmatprep.subr.mxu0 0.0
    %125 = vmatpush1.xpose.msra.mxu0 0.0
    %126 = vmatprep.subr.mxu0 0.0
    %127 = vmatpush1.xpose.msra.mxu0 0.0
    %128 = vmatprep.subr.mxu0 0.0
    %129 = vmatpush1.xpose.msra.mxu0 0.0
    %130 = vmatprep.subr.mxu0 0.0
    %131 = vmatpush1.xpose.msra.mxu0 0.0
    %132 = vmatprep.subr.mxu0 0.0
    %133 = vmatpush1.xpose.msra.mxu0 0.0
    %134 = vmatprep.subr.mxu0 0.0
    %135 = vmatpush1.xpose.msra.mxu0 0.0
    %136 = vmatprep.subr.mxu0 0.0
    %137 = vmatpush1.xpose.msra.mxu0 0.0
    %138 = vmatprep.subr.mxu0 0.0
    %139 = vmatpush1.xpose.msra.mxu0 0.0
    %140 = vmatprep.subr.mxu0 0.0
    %141 = vmatpush1.xpose.msra.mxu0 0.0
    %142 = vmatprep.subr.mxu0 0.0
    %143 = vmatpush1.xpose.msra.mxu0 0.0
    %144 = vmatprep.subr.mxu0 0.0
    %145 = vmatpush1.xpose.msra.mxu0 0.0
    %146 = vmatprep.mubr.f32.mxu0 0.0
    %147 = vmatmul.mubr.f32.gmra.mrb[0].mxu0 %v74
    %v148 = vpop.f32.mrb[0].mxu0
    %v149 = vadd.f32 0.0, %v148
    %v150 = vpop.f32.mrb[0].mxu0
    %151 = vmatprep.mubr.f32.mxu0 0.0
    %152 = vmatmul.mubr.f32.gmra.mrb[0].mxu0 %v77
    %v153 = vpop.f32.mrb[0].mxu0
    %v154 = vadd.f32 0.0, %v153
    %v155 = vpop.f32.mrb[0].mxu0
    %156 = vmatprep.mubr.f32.mxu0 0.0
    %157 = vmatmul.mubr.f32.gmra.mrb[0].mxu0 %v80
    %v158 = vpop.f32.mrb[0].mxu0
    %v159 = vadd.f32 0.0, %v158
    %v160 = vpop.f32.mrb[0].mxu0
    %161 = vdwg.mxu0
    %v162 = vsel %vm72, %v69, 0.0
    %163 = vadd.xlane.f32.xlu0 %v162
    %v164 = vpop.xlane.xlu0 %163
    %v165 = vsel %vm72, %v70, 0.0
    %166 = vadd.xlane.f32.xlu0 %v165
    %v167 = vpop.xlane.xlu0 %166
    %v168 = vsel %vm72, %v71, 0.0
    %169 = vadd.xlane.f32.xlu0 %v168
    %v170 = vpop.xlane.xlu0 %169
    %v172 = vsel %vm72, 1.0, 0
    %v175 = vsel %vm72, %v69, 0
    %v178 = vsel %vm72, %v70, 0
    %v181 = vsel %vm72, %v71, 0
    %183 = vmatprep.subr.mxu0 0.0
    %184 = vmatpush1.xpose.msra.mxu0 %v175
    %185 = vmatprep.subr.mxu0 0.0
    %186 = vmatpush1.xpose.msra.mxu0 %v178
    %187 = vmatprep.subr.mxu0 0.0
    %188 = vmatpush1.xpose.msra.mxu0 %v181
    %189 = vmatprep.subr.mxu0 0.0
    %190 = vmatpush1.xpose.msra.mxu0 0.0
    %191 = vmatprep.subr.mxu0 0.0
    %192 = vmatpush1.xpose.msra.mxu0 0.0
    %193 = vmatprep.subr.mxu0 0.0
    %194 = vmatpush1.xpose.msra.mxu0 0.0
    %195 = vmatprep.subr.mxu0 0.0
    %196 = vmatpush1.xpose.msra.mxu0 0.0
    %197 = vmatprep.subr.mxu0 0.0
    %198 = vmatpush1.xpose.msra.mxu0 0.0
    %199 = vmatprep.subr.mxu0 0.0
    %200 = vmatpush1.xpose.msra.mxu0 0.0
    %201 = vmatprep.subr.mxu0 0.0
    %202 = vmatpush1.xpose.msra.mxu0 0.0
    %203 = vmatprep.subr.mxu0 0.0
    %204 = vmatpush1.xpose.msra.mxu0 0.0
    %205 = vmatprep.subr.mxu0 0.0
    %206 = vmatpush1.xpose.msra.mxu0 0.0
    %207 = vmatprep.subr.mxu0 0.0
    %208 = vmatpush1.xpose.msra.mxu0 0.0
    %209 = vmatprep.subr.mxu0 0.0
    %210 = vmatpush1.xpose.msra.mxu0 0.0
    %211 = vmatprep.subr.mxu0 0.0
    %212 = vmatpush1.xpose.msra.mxu0 0.0
    %213 = vmatprep.subr.mxu0 0.0
    %214 = vmatpush1.xpose.msra.mxu0 0.0
    %215 = vmatprep.subr.mxu0 0.0
    %216 = vmatpush1.xpose.msra.mxu0 0.0
    %217 = vmatprep.subr.mxu0 0.0
    %218 = vmatpush1.xpose.msra.mxu0 0.0
    %219 = vmatprep.subr.mxu0 0.0
    %220 = vmatpush1.xpose.msra.mxu0 0.0
    %221 = vmatprep.subr.mxu0 0.0
    %222 = vmatpush1.xpose.msra.mxu0 0.0
    %223 = vmatprep.subr.mxu0 0.0
    %224 = vmatpush1.xpose.msra.mxu0 0.0
    %225 = vmatprep.subr.mxu0 0.0
    %226 = vmatpush1.xpose.msra.mxu0 0.0
    %227 = vmatprep.subr.mxu0 0.0
    %228 = vmatpush1.xpose.msra.mxu0 0.0
    %229 = vmatprep.subr.mxu0 0.0
    %230 = vmatpush1.xpose.msra.mxu0 0.0
    %231 = vmatprep.subr.mxu0 0.0
    %232 = vmatpush1.xpose.msra.mxu0 0.0
    %233 = vmatprep.subr.mxu0 0.0
    %234 = vmatpush1.xpose.msra.mxu0 0.0
    %235 = vmatprep.subr.mxu0 0.0
    %236 = vmatpush1.xpose.msra.mxu0 0.0
    %237 = vmatprep.subr.mxu0 0.0
    %238 = vmatpush1.xpose.msra.mxu0 0.0
    %239 = vmatprep.subr.mxu0 0.0
    %240 = vmatpush1.xpose.msra.mxu0 0.0
    %241 = vmatprep.subr.mxu0 0.0
    %242 = vmatpush1.xpose.msra.mxu0 0.0
    %243 = vmatprep.subr.mxu0 0.0
    %244 = vmatpush1.xpose.msra.mxu0 0.0
    %245 = vmatprep.subr.mxu0 0.0
    %246 = vmatpush1.xpose.msra.mxu0 0.0
    %247 = vmatprep.mubr.f32.mxu0 0.0
    %248 = vmatmul.mubr.f32.gmra.mrb[0].mxu0 %v172
    %v249 = vpop.f32.mrb[0].mxu0
    %v250 = vadd.f32 0.0, %v249
    %v251 = vpop.f32.mrb[0].mxu0
    %252 = vdwg.mxu0
    %vm253 = vcmask 64512
    %v254 = vsel %vm253, %v149, %v154
    %vm255 = vcmask 130048
    %v256 = vsel %vm255, %v254, %v159
    %v257 = vsel %vm253, %v164, %v167
    %v258 = vsel %vm255, %v257, %v170
    %v259 = vmul.f32 %v258, %v250
    %v260 = vrsqrt.pop %v259
    %v261 = vmul.f32 %v259, %v260
    %vm262 = vcmp.eq.f32.partialorder %v259, inf
    %v263 = vsel %vm262, %v259, %v261
    %vm264 = vcmp.eq.f32.partialorder %v259, 0.0
    %v265 = vand.u32 %v259, 2147483648
    %v266 = vsel %vm264, %v265, %v263
    %v267 = vmax.f32 %v266, 1e-08
    %v268 = vrcp.pop %v267
    %v269 = vmul.f32 %v256, %v268
    %vm270 = vcmask 7168
    %v271 = vsel %vm270, %v164, %v167
    %vm272 = vcmask 15360
    %v273 = vsel %vm272, %v271, %v170
    %v274 = vmax.f32 %v273, 1e-08
    %v275 = vrcp.pop %v274
    %v276 = vmul.f32 %v273, %v275
    %v277 = vmul.f32 %v64, %v64
    %v278 = vsel %vm72, %v277, 0.0
    %279 = vadd.xlane.f32.xlu0 %v278
    %v280 = vpop.xlane.xlu0 %279
    %v281 = vmax.f32 %v280, 1e-08
    %v282 = vrcp.pop %v281
    %v283 = vmul.f32 %v280, %v282
    %v284 = vmul.f32 %v66, %v66
    %v285 = vsel %vm72, %v284, 0.0
    %286 = vadd.xlane.f32.xlu0 %v285
    %v287 = vpop.xlane.xlu0 %286
    %v288 = vmax.f32 %v287, 1e-08
    %v289 = vrcp.pop %v288
    %v290 = vmul.f32 %v287, %v289
    %v291 = vmul.f32 %v68, %v68
    %v292 = vsel %vm72, %v291, 0.0
    %293 = vadd.xlane.f32.xlu0 %v292
    %v294 = vpop.xlane.xlu0 %293
    %v295 = vmax.f32 %v294, 1e-08
    %v296 = vrcp.pop %v295
    %v297 = vmul.f32 %v294, %v296
    %v298 = vsub.f32 0.0, %v283
    %v299 = vmul.f32 %v298, 2.0
    %v300 = vmul.f32 %v299, 1.442695
    %v301 = vpow.pop %v300
    %v302 = vsub.f32 0.0, %v290
    %v303 = vmul.f32 %v302, 2.0
    %v304 = vmul.f32 %v303, 1.442695
    %v305 = vpow.pop %v304
    %v306 = vsub.f32 0.0, %v297
    %v307 = vmul.f32 %v306, 2.0
    %v308 = vmul.f32 %v307, 1.442695
    %v309 = vpow.pop %v308
    %v310 = vadd.f32 %v305, %v309
    %v311 = vsel %vm272, %v301, %v310
    %v312 = vmul.f32 %v269, 2.0
    %v313 = vmul.f32 %v312, 1.442695
    %v314 = vpow.pop %v313
    %v315 = vsub.f32 0.0, %v269
    %v316 = vmul.f32 %v315, 2.0
    %v317 = vmul.f32 %v316, 1.442695
    %v318 = vpow.pop %v317
    %v319 = vlaneseq
    %v320 = vshrl.u32 %v319, 7
    %v321 = vadd.s32 %v320, 8
    %v322 = vadd.s32 %v320, 16
    %v323 = vlaneseq
    %v324 = vand.u32 %v323, 127
    %v325 = vmul.u32 %v324, 8
    %vm326 = vcmp.ge.s32.totalorder %v320, %v325
    %vm327 = vcmp.ge.s32.totalorder %v321, %v325
    %vm328 = vcmp.ge.s32.totalorder %v322, %v325
    %v329 = vadd.s32 %v324, 1
    %v330 = vmul.u32 %v329, 8
    %vm331 = vcmp.lt.s32.totalorder %v320, %v330
    %vm332 = vcmp.lt.s32.totalorder %v321, %v330
    %vm333 = vcmp.lt.s32.totalorder %v322, %v330
    %vm334 = vmand %vm326, %vm331
    %vm335 = vmand %vm327, %vm332
    %vm336 = vmand %vm328, %vm333
    %v337 = vsel %vm334, 1, 0
    %v338 = vsel %vm335, 1, 0
    %v339 = vsel %vm336, 1, 0
    %v340 = vcvt.s32.f32 %v337
    %v341 = vcvt.s32.f32 %v338
    %v342 = vcvt.s32.f32 %v339
    %v343 = vadd.f32 %v314, %v318
    %vm344 = vcmask 195584
    %v346 = vsel %vm344, %v343, 0
    %348 = vmatprep.subr.mxu0 0.0
    %349 = vmatpush1.msra.mxu0 %v340
    %350 = vmatprep.subr.mxu0 0.0
    %351 = vmatpush1.msra.mxu0 %v341
    %352 = vmatprep.subr.mxu0 0.0
    %353 = vmatpush1.msra.mxu0 %v342
    %354 = vmatprep.subr.mxu0 0.0
    %355 = vmatpush1.msra.mxu0 0.0
    %356 = vmatprep.subr.mxu0 0.0
    %357 = vmatpush1.msra.mxu0 0.0
    %358 = vmatprep.subr.mxu0 0.0
    %359 = vmatpush1.msra.mxu0 0.0
    %360 = vmatprep.subr.mxu0 0.0
    %361 = vmatpush1.msra.mxu0 0.0
    %362 = vmatprep.subr.mxu0 0.0
    %363 = vmatpush1.msra.mxu0 0.0
    %364 = vmatprep.subr.mxu0 0.0
    %365 = vmatpush1.msra.mxu0 0.0
    %366 = vmatprep.subr.mxu0 0.0
    %367 = vmatpush1.msra.mxu0 0.0
    %368 = vmatprep.subr.mxu0 0.0
    %369 = vmatpush1.msra.mxu0 0.0
    %370 = vmatprep.subr.mxu0 0.0
    %371 = vmatpush1.msra.mxu0 0.0
    %372 = vmatprep.subr.mxu0 0.0
    %373 = vmatpush1.msra.mxu0 0.0
    %374 = vmatprep.subr.mxu0 0.0
    %375 = vmatpush1.msra.mxu0 0.0
    %376 = vmatprep.subr.mxu0 0.0
    %377 = vmatpush1.msra.mxu0 0.0
    %378 = vmatprep.subr.mxu0 0.0
    %379 = vmatpush1.msra.mxu0 0.0
    %380 = vmatprep.subr.mxu0 0.0
    %381 = vmatpush1.msra.mxu0 0.0
    %382 = vmatprep.subr.mxu0 0.0
    %383 = vmatpush1.msra.mxu0 0.0
    %384 = vmatprep.subr.mxu0 0.0
    %385 = vmatpush1.msra.mxu0 0.0
    %386 = vmatprep.subr.mxu0 0.0
    %387 = vmatpush1.msra.mxu0 0.0
    %388 = vmatprep.subr.mxu0 0.0
    %389 = vmatpush1.msra.mxu0 0.0
    %390 = vmatprep.subr.mxu0 0.0
    %391 = vmatpush1.msra.mxu0 0.0
    %392 = vmatprep.subr.mxu0 0.0
    %393 = vmatpush1.msra.mxu0 0.0
    %394 = vmatprep.subr.mxu0 0.0
    %395 = vmatpush1.msra.mxu0 0.0
    %396 = vmatprep.subr.mxu0 0.0
    %397 = vmatpush1.msra.mxu0 0.0
    %398 = vmatprep.subr.mxu0 0.0
    %399 = vmatpush1.msra.mxu0 0.0
    %400 = vmatprep.subr.mxu0 0.0
    %401 = vmatpush1.msra.mxu0 0.0
    %402 = vmatprep.subr.mxu0 0.0
    %403 = vmatpush1.msra.mxu0 0.0
    %404 = vmatprep.subr.mxu0 0.0
    %405 = vmatpush1.msra.mxu0 0.0
    %406 = vmatprep.subr.mxu0 0.0
    %407 = vmatpush1.msra.mxu0 0.0
    %408 = vmatprep.subr.mxu0 0.0
    %409 = vmatpush1.msra.mxu0 0.0
    %410 = vmatprep.subr.mxu0 0.0
    %411 = vmatpush1.msra.mxu0 0.0
    %412 = vmatprep.mubr.f32.mxu0 0.0
    %413 = vmatmul.mubr.f32.gmra.mrb[0].mxu0 %v346
    %v414 = vpop.f32.mrb[0].mxu0
    %v415 = vadd.f32 0.0, %v414
    %v416 = vpop.f32.mrb[0].mxu0
    %417 = vdwg.mxu0
    %v418 = vmul.f32 %v276, 2.0
    %v419 = vmul.f32 %v418, 1.442695
    %v420 = vpow.pop %v419
    %v421 = vsub.f32 %v415, %v420
    %v422 = vadd.f32 %v421, %v311
    %v423 = vlog2.pop %v422
    %v424 = vmul.f32 %v423, 0.6931472
    %v425 = vadd.f32 %v424, %v418
    %vm426 = vcmask 23552
    %v427 = vsel %vm426, %v425, 0.0
    %v428 = vrot.slane %v427, 4
    %v429 = vadd.f32 %v427, %v428
    %v430 = vrot.slane %v429, 2
    %v431 = vadd.f32 %v429, %v430
    %v432 = vrot.slane %v431, 1
    %v433 = vadd.f32 %v431, %v432
    %v434 = vmul.f32 %v433, 0.125
    %vm435 = vcmask 16384
    %436 = vst.msk [vmem:[#allocation8] sm:$0x1] %vm435, %v434
    // Predicated region
    $region30: #{weight_ntxent_loss.1} parent=1 // pred_check
      _
    $region31: #{weight_ntxent_loss.1} parent=1 // pred_check_branch
      %438 = sbr.rel (0) target = $region33
    $region32: #{weight_ntxent_loss.1} parent=1 // pred_region
      %s440 = ssub.s32 16, 16
      %441 = vsyncadd [#allocation4], %s440
      %s443 = sshll.u32 [#allocation8], 4
      %s444 = int_to_ptr.vmem [resolvable:$true] %s443
      %446 = dma.vmem_to_hbm [thread:$0]  %s444, 16, %s4, [#allocation4]
    $region33: #{weight_ntxent_loss.1} parent=1 // pred_fallthru
      _
    // Predicated region
    $region34: #{weight_ntxent_loss.1} parent=1 // pred_check
      _
    $region35: #{weight_ntxent_loss.1} parent=1 // pred_check_branch
      %448 = sbr.rel (0) target = $region37
    $region36: #{weight_ntxent_loss.1} parent=1 // pred_region
      %449 = dma.done [#allocation4], 16
    $region37: #{weight_ntxent_loss.1} parent=1 // pred_fallthru
      _
    %450 = vsyncpa [#allocation3], 1
    %451 = vsyncpa [#allocation6], 1
    %452 = vsyncpa [#allocation4], 1

</llo_original>
